<compile_context>
chip_gen: v6e
topology: v6e:2x2x1
jax: 0.10.0
libtpu: 0.0.40
codegen_flags: <defaults>
</compile_context>

<pallas_src>
import functools

import jax
import jax.numpy as jnp
from jax.experimental import pallas as pl
from jax.experimental.pallas import tpu as pltpu


# ---------------------------------------------------------------------------
# Fused kernel
#   x_ref:  (1, Cin, THW)  bf16   per-image spatial tile (channels-first)
#   wf_ref: (Cf, Cin)      bf16   1x1-conv weight ("features" stand-in)
#   bf_ref: (Cf, 1)        f32    conv bias
#   wc_ref: (Cpad, Cf)     f32    classifier weight (PyTorch orientation, row-padded)
#   bc_ref: (Cpad, 1)      f32    classifier bias (row-padded)
#   o_ref:  (1, Cpad, 1)   f32    sigmoid probabilities (column layout)
#   acc_ref:(Cf, 1)        f32    running sum over HW (VMEM scratch)
# ---------------------------------------------------------------------------
def _fused_kernel(x_ref, wf_ref, bf_ref, wc_ref, bc_ref, o_ref, acc_ref, *, inv_hw):
    h = pl.program_id(1)

    @pl.when(h == 0)
    def _init():
        acc_ref[...] = jnp.zeros_like(acc_ref)

    xb = x_ref[0]                                                    # (Cin, THW) bf16
    # 1x1 conv as matmul; bf16 MXU inputs, f32 accumulation. Lane dim = THW (dense).
    feat = jnp.dot(wf_ref[...], xb, preferred_element_type=jnp.float32)   # (Cf, THW) f32
    feat = feat + bf_ref[...]                                        # bias, lane-broadcast
    feat = jnp.maximum(feat, 0.0)                                    # F.relu (f32 VPU)
    # Global average pool folded into a running sum over the HW axis.
    acc_ref[...] += jnp.sum(feat, axis=1, keepdims=True)             # (Cf, 1)

    @pl.when(h == pl.num_programs(1) - 1)
    def _finalize():
        pooled = acc_ref[...] * inv_hw                               # adaptive_avg_pool2d((1,1))
        logits = jnp.dot(wc_ref[...], pooled,
                         preferred_element_type=jnp.float32)         # (Cpad, 1)
        logits = logits + bc_ref[...]
        o_ref[0] = jax.nn.sigmoid(logits)                            # torch.sigmoid


# ---------------------------------------------------------------------------
# Wrapper
# ---------------------------------------------------------------------------
def multilabel_net_forward(x_nchw, params, *, hw_tile=None):
    """x_nchw: (N, Cin, H, W) float32 — PyTorch NCHW convention."""
    N, Cin, H, W = x_nchw.shape
    HW = H * W
    if hw_tile is None:
        hw_tile = 512 if HW % 512 == 0 else HW
    assert HW % hw_tile == 0, "hw_tile must divide H*W"
    n_hw = HW // hw_tile

    Cf = params["feat_w"].shape[0]
    nc = params["cls_w"].shape[0]
    c_pad = ((nc + 7) // 8) * 8                                      # sublane-pad classes

    # Channels-first flatten (free reshape, no transpose); bf16 HBM storage.
    x = x_nchw.reshape(N, Cin, HW).astype(jnp.bfloat16)
    wf = params["feat_w"].astype(jnp.bfloat16)                       # (Cf, Cin)
    bf = params["feat_b"].reshape(Cf, 1).astype(jnp.float32)         # (Cf, 1)
    wc = jnp.zeros((c_pad, Cf), jnp.float32).at[:nc].set(params["cls_w"])
    bc = jnp.zeros((c_pad, 1), jnp.float32).at[:nc, 0].set(params["cls_b"])

    flops = 2 * N * HW * Cin * Cf + 2 * N * Cf * c_pad
    bytes_accessed = (x.size * 2 + wf.size * 2 + bf.size * 4
                      + wc.size * 4 + bc.size * 4 + N * c_pad * 4)

    out = pl.pallas_call(
        functools.partial(_fused_kernel, inv_hw=1.0 / HW),
        out_shape=jax.ShapeDtypeStruct((N, c_pad, 1), jnp.float32),
        grid_spec=pltpu.PrefetchScalarGridSpec(
            num_scalar_prefetch=0,
            grid=(N, n_hw),                                          # (batch, HW-reduction)
            in_specs=[
                pl.BlockSpec((1, Cin, hw_tile), lambda n, h: (n, 0, h)),
                pl.BlockSpec((Cf, Cin), lambda n, h: (0, 0)),
                pl.BlockSpec((Cf, 1), lambda n, h: (0, 0)),
                pl.BlockSpec((c_pad, Cf), lambda n, h: (0, 0)),
                pl.BlockSpec((c_pad, 1), lambda n, h: (0, 0)),
            ],
            out_specs=pl.BlockSpec((1, c_pad, 1), lambda n, h: (n, 0, 0)),
            scratch_shapes=[pltpu.VMEM((Cf, 1), jnp.float32)],
        ),
        compiler_params=pltpu.CompilerParams(
            dimension_semantics=("parallel", "arbitrary"),
            vmem_limit_bytes=32 * 1024 * 1024,
        ),
        cost_estimate=pl.CostEstimate(
            flops=flops,
            transcendentals=N * c_pad,
            bytes_accessed=bytes_accessed,
        ),
    )(x, wf, bf, wc, bc)

    # Dropout (self.dropout) is not applied on the densenet branch of forward().
    return out[:, :nc, 0]                                            # (N, num_classes)


# ---------------------------------------------------------------------------
# Pure-JAX reference (same bf16 rounding of x / feat weight as the kernel)
# ---------------------------------------------------------------------------
def reference_forward(x_nchw, params):
    N, Cin, H, W = x_nchw.shape
    HW = H * W
    xb = x_nchw.reshape(N, Cin, HW).astype(jnp.bfloat16).astype(jnp.float32)
    wf = params["feat_w"].astype(jnp.bfloat16).astype(jnp.float32)
    feat = jnp.einsum("fi,nit->nft", wf, xb, precision=jax.lax.Precision.HIGHEST)
    feat = feat + params["feat_b"][None, :, None]
    feat = jnp.maximum(feat, 0.0)
    pooled = jnp.mean(feat, axis=2)                                  # (N, Cf)
    logits = jnp.dot(pooled, params["cls_w"].T,
                     precision=jax.lax.Precision.HIGHEST) + params["cls_b"]
    return jax.nn.sigmoid(logits)


def init_params(key, cin, cf, num_classes):
    k1, k2, k3, k4 = jax.random.split(key, 4)
    return {
        # synthetic "features" stage: 1x1-conv weight (out_ch, in_ch) and bias
        "feat_w": jax.random.normal(k1, (cf, cin), jnp.float32) * 0.1,
        "feat_b": jax.random.normal(k2, (cf,), jnp.float32) * 0.01,
        # PyTorch nn.Linear layout: (num_classes, in_features)
        "cls_w": jax.random.normal(k3, (num_classes, cf), jnp.float32) * 0.1,
        "cls_b": jax.random.normal(k4, (num_classes,), jnp.float32) * 0.01,
    }


if __name__ == "__main__":
    N, Cin, H, W = 2, 4, 16, 16
    Cf = 32             # synthetic feature channels (stand-in for densenet's 1024)
    num_classes = 5

    key = jax.random.PRNGKey(0)
    k_x, k_p = jax.random.split(key)
    x = jax.random.normal(k_x, (N, Cin, H, W), jnp.float32)
    params = init_params(k_p, Cin, Cf, num_classes)

    fwd = jax.jit(functools.partial(multilabel_net_forward, hw_tile=128))
    out = fwd(x, params)
    out = jax.block_until_ready(out)

    assert out.shape == (N, num_classes)
    assert bool(jnp.all((out >= 0.0) & (out <= 1.0)))               # sigmoid range
    ref = reference_forward(x, params)
    assert bool(jnp.allclose(out, ref, atol=1e-2)), "mismatch vs pure-JAX reference"
    print("KERNEL_OK")
</pallas_src>

<mosaic_0001>
module attributes {stable_mosaic.version = 11 : i64} {
  func.func @_fused_kernel(%arg0: i32, %arg1: i32, %arg2: memref<1x4x128xbf16, #tpu.memory_space<vmem>>, %arg3: memref<32x4xbf16, #tpu.memory_space<vmem>>, %arg4: memref<32x1xf32, #tpu.memory_space<vmem>>, %arg5: memref<8x32xf32, #tpu.memory_space<vmem>>, %arg6: memref<8x1xf32, #tpu.memory_space<vmem>>, %arg7: memref<1x8x1xf32, #tpu.memory_space<vmem>>, %arg8: memref<32x1xf32, #tpu.memory_space<vmem>>) attributes {dimension_semantics = [#tpu.dimension_semantics<parallel>, #tpu.dimension_semantics<arbitrary>], iteration_bounds = array<i64: 2, 2>, scalar_prefetch = 0 : i64, scratch_operands = 1 : i64, tpu.core_type = #tpu.core_type<tc>, window_params = [{transform_indices = @transform_0, window_bounds = array<i64: 1, 4, 128>}, {pipeline_mode = #tpu.pipeline_mode<synchronous>, transform_indices = @transform_1, window_bounds = array<i64: 32, 4>}, {pipeline_mode = #tpu.pipeline_mode<synchronous>, transform_indices = @transform_2, window_bounds = array<i64: 32, 1>}, {pipeline_mode = #tpu.pipeline_mode<synchronous>, transform_indices = @transform_3, window_bounds = array<i64: 8, 32>}, {pipeline_mode = #tpu.pipeline_mode<synchronous>, transform_indices = @transform_4, window_bounds = array<i64: 8, 1>}, {transform_indices = @transform_5, window_bounds = array<i64: 1, 8, 1>}]} {
    %c0_i32 = arith.constant 0 : i32
    %0 = arith.cmpi eq, %arg1, %c0_i32 : i32
    %1 = arith.extui %0 : i1 to i32
    %c0_i32_0 = arith.constant 0 : i32
    %2 = arith.cmpi ne, %1, %c0_i32_0 : i32
    scf.if %2 {
      %cst_14 = arith.constant 0.000000e+00 : f32
      %20 = vector.broadcast %cst_14 : f32 to vector<32x1xf32>
      %c0_15 = arith.constant 0 : index
      %c0_16 = arith.constant 0 : index
      %21 = vector.load %arg8[%c0_15, %c0_16] : memref<32x1xf32, #tpu.memory_space<vmem>>, vector<32x1xf32>
      tpu.vector_store %arg8[%c0_15, %c0_16], %20 {strides = array<i32>} : memref<32x1xf32, #tpu.memory_space<vmem>>, vector<32x1xf32>,
    } else {
    }
    %c0 = arith.constant 0 : index
    %c0_1 = arith.constant 0 : index
    %c0_2 = arith.constant 0 : index
    %3 = vector.load %arg2[%c0, %c0_1, %c0_2] : memref<1x4x128xbf16, #tpu.memory_space<vmem>>, vector<1x4x128xbf16>
    %4 = vector.shape_cast %3 : vector<1x4x128xbf16> to vector<4x128xbf16>
    %c0_3 = arith.constant 0 : index
    %c0_4 = arith.constant 0 : index
    %5 = vector.load %arg3[%c0_3, %c0_4] : memref<32x4xbf16, #tpu.memory_space<vmem>>, vector<32x4xbf16>
    %cst = arith.constant dense<0.000000e+00> : vector<32x128xf32>
    %6 = tpu.matmul %5, %4, %cst {dimension_numbers = #tpu.dot_dimension_numbers<[1], [0], [0], [1], [0, 0, 1, 1], [], []>} : vector<32x4xbf16>, vector<4x128xbf16>, vector<32x128xf32> -> vector<32x128xf32>
    %c0_5 = arith.constant 0 : index
    %c0_6 = arith.constant 0 : index
    %7 = vector.load %arg4[%c0_5, %c0_6] : memref<32x1xf32, #tpu.memory_space<vmem>>, vector<32x1xf32>
    %8 = vector.broadcast %7 : vector<32x1xf32> to vector<32x128xf32>
    %9 = arith.addf %6, %8 : vector<32x128xf32>
    %cst_7 = arith.constant 0.000000e+00 : f32
    %10 = vector.broadcast %cst_7 : f32 to vector<32x128xf32>
    %11 = arith.maximumf %9, %10 : vector<32x128xf32>
    %c0_8 = arith.constant 0 : index
    %c0_9 = arith.constant 0 : index
    %12 = vector.load %arg8[%c0_8, %c0_9] : memref<32x1xf32, #tpu.memory_space<vmem>>, vector<32x1xf32>
    %cst_10 = arith.constant dense<0.000000e+00> : vector<32xf32>
    %13 = vector.multi_reduction <add>, %11, %cst_10 [1] : vector<32x128xf32> to vector<32xf32>
    %14 = vector.shape_cast %13 : vector<32xf32> to vector<32x1xf32>
    %15 = arith.addf %12, %14 : vector<32x1xf32>
    %c0_11 = arith.constant 0 : index
    %c0_12 = arith.constant 0 : index
    %16 = vector.load %arg8[%c0_11, %c0_12] : memref<32x1xf32, #tpu.memory_space<vmem>>, vector<32x1xf32>
    tpu.vector_store %arg8[%c0_11, %c0_12], %15 {strides = array<i32>} : memref<32x1xf32, #tpu.memory_space<vmem>>, vector<32x1xf32>,
    %c1_i32 = arith.constant 1 : i32
    %17 = arith.cmpi eq, %arg1, %c1_i32 : i32
    %18 = arith.extui %17 : i1 to i32
    %c0_i32_13 = arith.constant 0 : i32
    %19 = arith.cmpi ne, %18, %c0_i32_13 : i32
    scf.if %19 {
      %c0_14 = arith.constant 0 : index
      %c0_15 = arith.constant 0 : index
      %20 = vector.load %arg8[%c0_14, %c0_15] : memref<32x1xf32, #tpu.memory_space<vmem>>, vector<32x1xf32>
      %cst_16 = arith.constant 3.906250e-03 : f32
      %21 = vector.broadcast %cst_16 : f32 to vector<32x1xf32>
      %22 = arith.mulf %20, %21 : vector<32x1xf32>
      %c0_17 = arith.constant 0 : index
      %c0_18 = arith.constant 0 : index
      %23 = vector.load %arg5[%c0_17, %c0_18] : memref<8x32xf32, #tpu.memory_space<vmem>>, vector<8x32xf32>
      %cst_19 = arith.constant dense<0.000000e+00> : vector<8x1xf32>
      %24 = tpu.matmul %23, %22, %cst_19 {dimension_numbers = #tpu.dot_dimension_numbers<[1], [0], [0], [1], [0, 0, 1, 1], [], []>} : vector<8x32xf32>, vector<32x1xf32>, vector<8x1xf32> -> vector<8x1xf32>
      %c0_20 = arith.constant 0 : index
      %c0_21 = arith.constant 0 : index
      %25 = vector.load %arg6[%c0_20, %c0_21] : memref<8x1xf32, #tpu.memory_space<vmem>>, vector<8x1xf32>
      %26 = arith.addf %24, %25 : vector<8x1xf32>
      %27 = arith.negf %26 : vector<8x1xf32>
      %28 = math.exp %27 : vector<8x1xf32>
      %cst_22 = arith.constant 1.000000e+00 : f32
      %29 = vector.broadcast %cst_22 : f32 to vector<8x1xf32>
      %30 = arith.addf %29, %28 : vector<8x1xf32>
      %31 = arith.divf %29, %30 : vector<8x1xf32>
      %c0_23 = arith.constant 0 : index
      %c0_24 = arith.constant 0 : index
      %c0_25 = arith.constant 0 : index
      %32 = vector.load %arg7[%c0_23, %c0_24, %c0_25] : memref<1x8x1xf32, #tpu.memory_space<vmem>>, vector<1x8x1xf32>
      %33 = vector.shape_cast %32 : vector<1x8x1xf32> to vector<8x1xf32>
      %34 = vector.shape_cast %31 : vector<8x1xf32> to vector<1x8x1xf32>
      tpu.vector_store %arg7[%c0_23, %c0_24, %c0_25], %34 {strides = array<i32>} : memref<1x8x1xf32, #tpu.memory_space<vmem>>, vector<1x8x1xf32>,
    } else {
    }
    return
  }
  func.func @transform_0(%arg0: i32, %arg1: i32) -> (i32, i32, i32) {
    %c0_i32 = arith.constant 0 : i32
    %c0_i32_0 = arith.constant 0 : i32
    return %arg0, %c0_i32, %arg1 : i32, i32, i32
  }
  func.func @transform_1(%arg0: i32, %arg1: i32) -> (i32, i32) {
    %c0_i32 = arith.constant 0 : i32
    %c0_i32_0 = arith.constant 0 : i32
    %c0_i32_1 = arith.constant 0 : i32
    return %c0_i32, %c0_i32_0 : i32, i32
  }
  func.func @transform_2(%arg0: i32, %arg1: i32) -> (i32, i32) {
    %c0_i32 = arith.constant 0 : i32
    %c0_i32_0 = arith.constant 0 : i32
    %c0_i32_1 = arith.constant 0 : i32
    return %c0_i32, %c0_i32_0 : i32, i32
  }
  func.func @transform_3(%arg0: i32, %arg1: i32) -> (i32, i32) {
    %c0_i32 = arith.constant 0 : i32
    %c0_i32_0 = arith.constant 0 : i32
    %c0_i32_1 = arith.constant 0 : i32
    return %c0_i32, %c0_i32_0 : i32, i32
  }
  func.func @transform_4(%arg0: i32, %arg1: i32) -> (i32, i32) {
    %c0_i32 = arith.constant 0 : i32
    %c0_i32_0 = arith.constant 0 : i32
    %c0_i32_1 = arith.constant 0 : i32
    return %c0_i32, %c0_i32_0 : i32, i32
  }
  func.func @transform_5(%arg0: i32, %arg1: i32) -> (i32, i32, i32) {
    %c0_i32 = arith.constant 0 : i32
    %c0_i32_0 = arith.constant 0 : i32
    %c0_i32_1 = arith.constant 0 : i32
    return %arg0, %c0_i32, %c0_i32_0 : i32, i32, i32
  }
}

</mosaic_0001>

<llo_original>
// kernel: multilabel_net_forward.1
$region0: #{multilabel_net_forward.1}
  #allocation0 [shape = 'u32[]', space=smem, size = 0x4, offset = 0x4, fixed_abs, tag = 'smem constant byte address 0x4 - core index']
  #allocation1 [shape = 'u32[144,128]{1,0:T(1,128)}', space=vmem, size = 0x12000, scoped, tag = 'internal scratch']
  #allocation2 [shape = 'f32[32,1]{1,0:T(8,128)}', space=vmem, size = 0x4000, scoped, tag = 'scratch operand']
  %s0 = inlined_call_operand.vmem [shape: bf16[2,4,256], index: 0, kind: input, shape index: {}]
  %s1 = inlined_call_operand.vmem [shape: bf16[32,4], index: 1, kind: input, shape index: {}]
  %s2 = inlined_call_operand.vmem [shape: f32[32,1], index: 2, kind: input, shape index: {}]
  %s3 = inlined_call_operand.vmem [shape: f32[8,32], index: 3, kind: input, shape index: {}]
  %s4 = inlined_call_operand.vmem [shape: f32[8,1], index: 4, kind: input, shape index: {}]
  %s5 = inlined_call_operand.vmem [shape: f32[2,8,1], index: 5, kind: output, shape index: {}]
  %s6 = sld [smem:[#allocation0]]
  $region61: #{multilabel_net_forward.1} parent=0
    _
  %s8 = ssub.s32 1, %s6
  %s9 = scalar_select 0, %s8, %s6
  loop: start=0, step=1, limit=6
  $region2: #{multilabel_net_forward.1} parent=0 // loop_pre_header
    _
  $region3: #{multilabel_net_forward.1} parent=0 // loop_header
    %s11 = sphi 0, %s15
    %p12 = scmp.ge.s32.totalorder %s11, 6
    %s18 = sphi 0, %s30
    %s19 = sphi 0, %s26
    %s20 = sphi 0, %s18
    %s21 = sphi 0, %s19
    %s22 = sphi 0, %s20
    %s23 = sphi 0, %s21
    %s35 = sphi 0, %s37
    %s38 = sphi 0, %s35
    %s39 = sphi 0, %s38
    %s55 = sphi 0, %s39
    %s59 = sphi 0, %s59
    %s61 = sphi 0, %s59
    %s62 = sphi 0, %s61
    %s76 = sphi 0, %s62
    %s80 = sphi 0, %s80
    %s82 = sphi 0, %s80
    %s83 = sphi 0, %s82
    %s97 = sphi 0, %s83
    %s101 = sphi 0, %s101
    %s103 = sphi 0, %s101
    %s104 = sphi 0, %s103
    %s118 = sphi 0, %s104
    %s122 = sphi 0, %s122
    %s124 = sphi 0, %s122
    %s125 = sphi 0, %s124
    %s139 = sphi 0, %s125
    %s145 = sphi 0, %s147
    %s148 = sphi 0, %s145
    %s149 = sphi 0, %s148
    %s165 = sphi 0, %s149
  $region4: #{multilabel_net_forward.1} parent=0 // loop_header_branch
    %14 = sbr.rel (%p12) target = $region8
  $region5: #{multilabel_net_forward.1} parent=0 // loop_body
    %s16 = ssub.s32 %s11, 1
    %s17 = ssub.s32 %s11, 2
    %s24 = sadd.s32 1, %s19
    %p25 = scmp.ge.s32.totalorder %s24, 2
    %s26 = scalar_select %p25, 0, %s24
    %s27 = sadd.s32 1, %s18
    %s28 = scalar_select %p25, %s27, %s18
    %p29 = scmp.ge.s32.totalorder %s28, 2
    %s30 = scalar_select %p29, 0, %s28
    %s31 = ssub.s32 %s18, %s30
    %s32 = ssub.s32 %s19, %s26
    %s33 = sor.u32 %s31, %s32
    %p34 = scmp.eq.s32.totalorder %s33, 0
    %s36 = sadd.s32 %s35, 1
    %s37 = scalar_select %p34, %s35, %s36
    %p40 = pneg %p34
    %p41 = scmp.eq.s32.totalorder %s11, 3
    %p42 = por %p40, %p41
    %p43 = scmp.ne.s32.totalorder %s35, %s38
    %p44 = scmp.eq.s32.totalorder %s11, 0
    %p45 = por %p43, %p44
    %p46 = scmp.ne.s32.totalorder %s35, %s38
    %p47 = scmp.eq.s32.totalorder %s16, 3
    %p48 = por %p46, %p47
    %p49 = scmp.ne.s32.totalorder %s38, %s39
    %p50 = scmp.eq.s32.totalorder %s16, 0
    %p51 = por %p49, %p50
    %p52 = scmp.ne.s32.totalorder %s38, %s39
    %p53 = scmp.eq.s32.totalorder %s17, 3
    %p54 = por %p52, %p53
    %p56 = scmp.ne.s32.totalorder %s39, %s55
    %p57 = scmp.eq.s32.totalorder %s17, 0
    %p58 = por %p56, %p57
    %s60 = sadd.s32 %s59, 1
    %p63 = scmp.eq.s32.totalorder %s11, 3
    %p64 = scmp.ne.s32.totalorder %s59, %s61
    %p65 = scmp.eq.s32.totalorder %s11, 0
    %p66 = por %p64, %p65
    %p67 = scmp.ne.s32.totalorder %s59, %s61
    %p68 = scmp.eq.s32.totalorder %s16, 3
    %p69 = por %p67, %p68
    %p70 = scmp.ne.s32.totalorder %s61, %s62
    %p71 = scmp.eq.s32.totalorder %s16, 0
    %p72 = por %p70, %p71
    %p73 = scmp.ne.s32.totalorder %s61, %s62
    %p74 = scmp.eq.s32.totalorder %s17, 3
    %p75 = por %p73, %p74
    %p77 = scmp.ne.s32.totalorder %s62, %s76
    %p78 = scmp.eq.s32.totalorder %s17, 0
    %p79 = por %p77, %p78
    %s81 = sadd.s32 %s80, 1
    %p84 = scmp.eq.s32.totalorder %s11, 3
    %p85 = scmp.ne.s32.totalorder %s80, %s82
    %p86 = scmp.eq.s32.totalorder %s11, 0
    %p87 = por %p85, %p86
    %p88 = scmp.ne.s32.totalorder %s80, %s82
    %p89 = scmp.eq.s32.totalorder %s16, 3
    %p90 = por %p88, %p89
    %p91 = scmp.ne.s32.totalorder %s82, %s83
    %p92 = scmp.eq.s32.totalorder %s16, 0
    %p93 = por %p91, %p92
    %p94 = scmp.ne.s32.totalorder %s82, %s83
    %p95 = scmp.eq.s32.totalorder %s17, 3
    %p96 = por %p94, %p95
    %p98 = scmp.ne.s32.totalorder %s83, %s97
    %p99 = scmp.eq.s32.totalorder %s17, 0
    %p100 = por %p98, %p99
    %s102 = sadd.s32 %s101, 1
    %p105 = scmp.eq.s32.totalorder %s11, 3
    %p106 = scmp.ne.s32.totalorder %s101, %s103
    %p107 = scmp.eq.s32.totalorder %s11, 0
    %p108 = por %p106, %p107
    %p109 = scmp.ne.s32.totalorder %s101, %s103
    %p110 = scmp.eq.s32.totalorder %s16, 3
    %p111 = por %p109, %p110
    %p112 = scmp.ne.s32.totalorder %s103, %s104
    %p113 = scmp.eq.s32.totalorder %s16, 0
    %p114 = por %p112, %p113
    %p115 = scmp.ne.s32.totalorder %s103, %s104
    %p116 = scmp.eq.s32.totalorder %s17, 3
    %p117 = por %p115, %p116
    %p119 = scmp.ne.s32.totalorder %s104, %s118
    %p120 = scmp.eq.s32.totalorder %s17, 0
    %p121 = por %p119, %p120
    %s123 = sadd.s32 %s122, 1
    %p126 = scmp.eq.s32.totalorder %s11, 3
    %p127 = scmp.ne.s32.totalorder %s122, %s124
    %p128 = scmp.eq.s32.totalorder %s11, 0
    %p129 = por %p127, %p128
    %p130 = scmp.ne.s32.totalorder %s122, %s124
    %p131 = scmp.eq.s32.totalorder %s16, 3
    %p132 = por %p130, %p131
    %p133 = scmp.ne.s32.totalorder %s124, %s125
    %p134 = scmp.eq.s32.totalorder %s16, 0
    %p135 = por %p133, %p134
    %p136 = scmp.ne.s32.totalorder %s124, %s125
    %p137 = scmp.eq.s32.totalorder %s17, 3
    %p138 = por %p136, %p137
    %p140 = scmp.ne.s32.totalorder %s125, %s139
    %p141 = scmp.eq.s32.totalorder %s17, 0
    %p142 = por %p140, %p141
    %s143 = ssub.s32 %s18, %s30
    %p144 = scmp.eq.s32.totalorder %s143, 0
    %s146 = sadd.s32 %s145, 1
    %s147 = scalar_select %p144, %s145, %s146
    %p150 = pneg %p144
    %p151 = scmp.eq.s32.totalorder %s11, 3
    %p152 = por %p150, %p151
    %p153 = scmp.ne.s32.totalorder %s145, %s148
    %p154 = scmp.eq.s32.totalorder %s11, 0
    %p155 = por %p153, %p154
    %p156 = scmp.ne.s32.totalorder %s145, %s148
    %p157 = scmp.eq.s32.totalorder %s16, 3
    %p158 = por %p156, %p157
    %p159 = scmp.ne.s32.totalorder %s148, %s149
    %p160 = scmp.eq.s32.totalorder %s16, 0
    %p161 = por %p159, %p160
    %p162 = scmp.ne.s32.totalorder %s148, %s149
    %p163 = scmp.eq.s32.totalorder %s17, 3
    %p164 = por %p162, %p163
    %p166 = scmp.ne.s32.totalorder %s149, %s165
    %p167 = scmp.eq.s32.totalorder %s17, 0
    %p168 = por %p166, %p167
    %p169 = scmp.le.s32.totalorder 1, %s11
    %p170 = scmp.lt.s32.totalorder %s11, 5
    %p171 = pnand %p169, %p170
    %p172 = pneg %p171
    // Predicated region
    $region9: #{multilabel_net_forward.1} parent=5 // pred_check
      _
    $region10: #{multilabel_net_forward.1} parent=5 // pred_check_branch
      %174 = sbr.rel (%p171) target = $region12
    $region11: #{multilabel_net_forward.1} parent=5 // pred_region
      %s175 = ssub.s32 %s11, 1
      // Predicated region
      $region13: #{multilabel_net_forward.1} parent=11 // pred_check
        %p176 = pneg %p72
      $region14: #{multilabel_net_forward.1} parent=11 // pred_check_branch
        %178 = sbr.rel (%p176) target = $region16
      $region15: #{multilabel_net_forward.1} parent=11 // pred_region
        _
      $region16: #{multilabel_net_forward.1} parent=11 // pred_fallthru
        _
      // Predicated region
      $region17: #{multilabel_net_forward.1} parent=11 // pred_check
        %p179 = pneg %p93
      $region18: #{multilabel_net_forward.1} parent=11 // pred_check_branch
        %181 = sbr.rel (%p179) target = $region20
      $region19: #{multilabel_net_forward.1} parent=11 // pred_region
        _
      $region20: #{multilabel_net_forward.1} parent=11 // pred_fallthru
        _
      // Predicated region
      $region21: #{multilabel_net_forward.1} parent=11 // pred_check
        %p182 = pneg %p114
      $region22: #{multilabel_net_forward.1} parent=11 // pred_check_branch
        %184 = sbr.rel (%p182) target = $region24
      $region23: #{multilabel_net_forward.1} parent=11 // pred_region
        _
      $region24: #{multilabel_net_forward.1} parent=11 // pred_fallthru
        _
      // Predicated region
      $region25: #{multilabel_net_forward.1} parent=11 // pred_check
        %p185 = pneg %p135
      $region26: #{multilabel_net_forward.1} parent=11 // pred_check_branch
        %187 = sbr.rel (%p185) target = $region28
      $region27: #{multilabel_net_forward.1} parent=11 // pred_region
        _
      $region28: #{multilabel_net_forward.1} parent=11 // pred_fallthru
        _
    $region12: #{multilabel_net_forward.1} parent=5 // pred_fallthru
      _
    %p188 = scmp.lt.s32.totalorder %s11, 4
    // Predicated region
    $region29: #{multilabel_net_forward.1} parent=5 // pred_check
      %p189 = pneg %p188
    $region30: #{multilabel_net_forward.1} parent=5 // pred_check_branch
      %191 = sbr.rel (%p189) target = $region32
    $region31: #{multilabel_net_forward.1} parent=5 // pred_region
      // Predicated region
      $region33: #{multilabel_net_forward.1} parent=31 // pred_check
        %p192 = pneg %p45
      $region34: #{multilabel_net_forward.1} parent=31 // pred_check_branch
        %194 = sbr.rel (%p192) target = $region36
      $region35: #{multilabel_net_forward.1} parent=31 // pred_region
        %p195 = scmp.lt.s32.totalorder %s18, 1
        %s196 = scalar_select %p195, %s18, 1
        %p197 = scmp.lt.s32.totalorder %s19, 1
        %s198 = scalar_select %p197, %s19, 1
        %s199 = smul.addr %s196, 2
        %s200 = sadd.s32 %s198, %s199
        %s201 = smul.addr %s200, 2
        %s202 = scalar_lea.vmem %s0, %s201
      $region36: #{multilabel_net_forward.1} parent=31 // pred_fallthru
        _
    $region32: #{multilabel_net_forward.1} parent=5 // pred_fallthru
      _
    %p203 = scmp.le.s32.totalorder 1, %s11
    %p204 = scmp.lt.s32.totalorder %s11, 5
    %p205 = pnand %p203, %p204
    %p206 = pneg %p205
    // Predicated region
    $region37: #{multilabel_net_forward.1} parent=5 // pred_check
      _
    $region38: #{multilabel_net_forward.1} parent=5 // pred_check_branch
      %208 = sbr.rel (%p205) target = $region40
    $region39: #{multilabel_net_forward.1} parent=5 // pred_region
      %s209 = ssub.s32 %s11, 1
      %p210 = scmp.lt.s32.totalorder %s20, 1
      %s211 = scalar_select %p210, %s20, 1
      %p212 = scmp.lt.s32.totalorder %s21, 1
      %s213 = scalar_select %p212, %s21, 1
      %s214 = smul.addr %s211, 2
      %s215 = sadd.s32 %s213, %s214
      %s216 = smul.addr %s215, 2
      %s217 = scalar_lea.vmem %s0, %s216
      %p218 = pneg %p51
      %p219 = pneg %p48
      %p220 = pneg %p72
      %p221 = pneg %p69
      %p222 = pneg %p93
      %p223 = pneg %p90
      %p224 = pneg %p114
      %p225 = pneg %p111
      %p226 = pneg %p135
      %p227 = pneg %p132
      %p228 = pneg %p161
      %p229 = pneg %p158
      %p230 = scmp.lt.s32.totalorder %s20, 1
      %s231 = scalar_select %p230, %s20, 1
      %s232 = smul.addr %s231, 8
      %s233 = scalar_lea.vmem %s5, %s232
      %p234 = scmp.lt.s32.totalorder %s20, 1
      %s235 = scalar_select %p234, %s20, 1
      %p236 = scmp.lt.s32.totalorder %s21, 1
      %s237 = scalar_select %p236, %s21, 1
      %s238 = smul.addr %s235, 2
      %s239 = sadd.s32 %s237, %s238
      %s240 = smul.addr %s239, 2
      %s241 = scalar_lea.vmem %s0, %s240
      %p242 = scmp.lt.s32.totalorder %s20, 1
      %s243 = scalar_select %p242, %s20, 1
      %s244 = smul.addr %s243, 8
      %s245 = scalar_lea.vmem %s5, %s244
      %p247 = scmp.eq.s32.totalorder %s21, 0
      // Predicated region
      $region41: #{multilabel_net_forward.1} parent=39 // pred_check
        %p248 = pneg %p247
      $region42: #{multilabel_net_forward.1} parent=39 // pred_check_branch
        %250 = sbr.rel (%p248) target = $region44
      $region43: #{multilabel_net_forward.1} parent=39 // pred_region
        %vm251 = vcmask 7168
        %252 = vst.msk [vmem:[#allocation2] sm:$0xff] %vm251, 0.0
        %253 = vst.msk [vmem:[#allocation2 + $0x8] sm:$0xff] %vm251, 0.0
        %254 = vst.msk [vmem:[#allocation2 + $0x10] sm:$0xff] %vm251, 0.0
        %255 = vst.msk [vmem:[#allocation2 + $0x18] sm:$0xff] %vm251, 0.0
      $region44: #{multilabel_net_forward.1} parent=39 // pred_fallthru
        _
      %v256 = vld [vmem:[%s241] sm:$0x3]
      %v257 = vld [vmem:[%s1] sm:$0xf]
      %v258 = vld [vmem:[%s1 + $0x4] sm:$0xf]
      %v259 = vld [vmem:[%s1 + $0x8] sm:$0xf]
      %v260 = vld [vmem:[%s1 + $0xc] sm:$0xf]
      %v261 = vld [vmem:[%s2] sm:$0xff]
      %v262 = vld [vmem:[%s2 + $0x8] sm:$0xff]
      %v263 = vld [vmem:[%s2 + $0x10] sm:$0xff]
      %v264 = vld [vmem:[%s2 + $0x18] sm:$0xff]
      %266 = vset.pattern.permute.xlu0 0
      %267 = vperm.xlu0 %266, %v261
      %v268 = vpop.permute.xlu0 %267
      %271 = vset.pattern.permute.xlu0 0
      %272 = vperm.xlu0 %271, %v262
      %v273 = vpop.permute.xlu0 %272
      %276 = vset.pattern.permute.xlu0 0
      %277 = vperm.xlu0 %276, %v263
      %v278 = vpop.permute.xlu0 %277
      %281 = vset.pattern.permute.xlu0 0
      %282 = vperm.xlu0 %281, %v264
      %v283 = vpop.permute.xlu0 %282
      %v289 = vunpack.c.l.b16 %v257
      %v290 = vunpack.c.l.b16 %v258
      %v291 = vunpack.c.l.b16 %v259
      %v292 = vunpack.c.l.b16 %v260
      %v293 = vpack.c.b16 %v290, %v289
      %v294 = vpack.c.b16 %v292, %v291
      %vm295 = vcmask 31744
      %v297 = vsel %vm295, %v293, 0
      %v300 = vsel %vm295, %v294, 0
      %vm302 = vcmask 1041408
      %v304 = vsel %vm302, %v256, 0
      %306 = vmatprep.subr.bf16.mxu0 0
      %307 = vmatpush1.bf16.msra.mxu0 0
      %308 = vmatprep.subr.bf16.mxu0 0
      %309 = vmatpush1.bf16.msra.mxu0 0
      %310 = vmatprep.subr.bf16.mxu0 0
      %311 = vmatpush1.bf16.msra.mxu0 0
      %312 = vmatprep.subr.bf16.mxu0 0
      %313 = vmatpush1.bf16.msra.mxu0 0
      %314 = vmatprep.subr.bf16.mxu0 0
      %315 = vmatpush1.bf16.msra.mxu0 0
      %316 = vmatprep.subr.bf16.mxu0 0
      %317 = vmatpush1.bf16.msra.mxu0 0
      %318 = vmatprep.subr.bf16.mxu0 0
      %319 = vmatpush1.bf16.msra.mxu0 0
      %320 = vmatprep.subr.bf16.mxu0 0
      %321 = vmatpush1.bf16.msra.mxu0 %v304
      %322 = vmatprep.subr.bf16.mxu0 0
      %323 = vmatpush2.bf16.msra.mxu0 0
      %324 = vmatprep.subr.bf16.mxu0 0
      %325 = vmatpush2.bf16.msra.mxu0 0
      %326 = vmatprep.subr.bf16.mxu0 0
      %327 = vmatpush2.bf16.msra.mxu0 0
      %328 = vmatprep.subr.bf16.mxu0 0
      %329 = vmatpush2.bf16.msra.mxu0 0
      %330 = vmatprep.subr.bf16.mxu0 0
      %331 = vmatpush2.bf16.msra.mxu0 0
      %332 = vmatprep.subr.bf16.mxu0 0
      %333 = vmatpush2.bf16.msra.mxu0 0
      %334 = vmatprep.subr.bf16.mxu0 0
      %335 = vmatpush2.bf16.msra.mxu0 0
      %336 = vmatprep.subr.bf16.mxu0 0
      %337 = vmatpush2.bf16.msra.mxu0 0
      %338 = vmatprep.mubr.bf16.mxu0 0
      %339 = vmatmul.mubr.bf16.gmra.mxu0 %v297
      %v340 = vpop.f32.mrf.mxu0
      %v341 = vadd.f32 %v268, %v340
      %v342 = vpop.f32.mrf.mxu0
      %v343 = vpop.f32.mrf.mxu0
      %v344 = vadd.f32 %v273, %v343
      %v345 = vpop.f32.mrf.mxu0
      %346 = vmatprep.mubr.bf16.mxu0 0
      %347 = vmatmul.mubr.bf16.gmra.mxu0 %v300
      %v348 = vpop.f32.mrf.mxu0
      %v349 = vadd.f32 %v278, %v348
      %v350 = vpop.f32.mrf.mxu0
      %v351 = vpop.f32.mrf.mxu0
      %v352 = vadd.f32 %v283, %v351
      %v353 = vpop.f32.mrf.mxu0
      %354 = vdwg.mxu0
      %v355 = vmax.f32 %v341, 0.0
      %v356 = vmax.f32 %v344, 0.0
      %v357 = vmax.f32 %v349, 0.0
      %v358 = vmax.f32 %v352, 0.0
      %v359 = vld [vmem:[#allocation2] sm:$0xff]
      %v360 = vld [vmem:[#allocation2 + $0x8] sm:$0xff]
      %v361 = vld [vmem:[#allocation2 + $0x10] sm:$0xff]
      %v362 = vld [vmem:[#allocation2 + $0x18] sm:$0xff]
      %363 = vadd.xlane.f32.xlu0 %v355
      %v364 = vpop.xlane.xlu0 %363
      %365 = vadd.xlane.f32.xlu0 %v356
      %v366 = vpop.xlane.xlu0 %365
      %367 = vadd.xlane.f32.xlu0 %v357
      %v368 = vpop.xlane.xlu0 %367
      %369 = vadd.xlane.f32.xlu0 %v358
      %v370 = vpop.xlane.xlu0 %369
      %v371 = vadd.f32 %v359, %v364
      %v372 = vadd.f32 %v360, %v366
      %v373 = vadd.f32 %v361, %v368
      %v374 = vadd.f32 %v362, %v370
      %vm375 = vcmask 7168
      %376 = vst.msk [vmem:[#allocation2] sm:$0xff] %vm375, %v371
      %377 = vst.msk [vmem:[#allocation2 + $0x8] sm:$0xff] %vm375, %v372
      %378 = vst.msk [vmem:[#allocation2 + $0x10] sm:$0xff] %vm375, %v373
      %379 = vst.msk [vmem:[#allocation2 + $0x18] sm:$0xff] %vm375, %v374
      %p380 = scmp.eq.s32.totalorder %s21, 1
      // Predicated region
      $region45: #{multilabel_net_forward.1} parent=39 // pred_check
        %p381 = pneg %p380
      $region46: #{multilabel_net_forward.1} parent=39 // pred_check_branch
        %383 = sbr.rel (%p381) target = $region48
      $region47: #{multilabel_net_forward.1} parent=39 // pred_region
        %v384 = vld [vmem:[#allocation2] sm:$0xff]
        %v385 = vld [vmem:[#allocation2 + $0x8] sm:$0xff]
        %v386 = vld [vmem:[#allocation2 + $0x10] sm:$0xff]
        %v387 = vld [vmem:[#allocation2 + $0x18] sm:$0xff]
        %v388 = vmul.f32 %v384, 0.00390625
        %v389 = vmul.f32 %v385, 0.00390625
        %v390 = vmul.f32 %v386, 0.00390625
        %v391 = vmul.f32 %v387, 0.00390625
        %v392 = vld [vmem:[%s3] sm:$0xff]
        %v393 = vld [vmem:[%s4] sm:$0xff]
        %vm394 = vcmask 261120
        %v396 = vsel %vm394, %v392, 0
        %398 = vmatprep.subr.mxu0 0.0
        %399 = vmatpush1.msra.mxu0 0.0
        %400 = vmatprep.subr.mxu0 0.0
        %401 = vmatpush1.msra.mxu0 0.0
        %402 = vmatprep.subr.mxu0 0.0
        %403 = vmatpush1.msra.mxu0 0.0
        %404 = vmatprep.subr.mxu0 0.0
        %405 = vmatpush1.msra.mxu0 0.0
        %406 = vmatprep.subr.mxu0 0.0
        %407 = vmatpush1.msra.mxu0 0.0
        %408 = vmatprep.subr.mxu0 0.0
        %409 = vmatpush1.msra.mxu0 0.0
        %410 = vmatprep.subr.mxu0 0.0
        %411 = vmatpush1.msra.mxu0 0.0
        %412 = vmatprep.subr.mxu0 0.0
        %413 = vmatpush1.msra.mxu0 0.0
        %414 = vmatprep.subr.mxu0 0.0
        %415 = vmatpush1.msra.mxu0 0.0
        %416 = vmatprep.subr.mxu0 0.0
        %417 = vmatpush1.msra.mxu0 0.0
        %418 = vmatprep.subr.mxu0 0.0
        %419 = vmatpush1.msra.mxu0 0.0
        %420 = vmatprep.subr.mxu0 0.0
        %421 = vmatpush1.msra.mxu0 0.0
        %422 = vmatprep.subr.mxu0 0.0
        %423 = vmatpush1.msra.mxu0 %v391
        %424 = vmatprep.subr.mxu0 0.0
        %425 = vmatpush1.msra.mxu0 %v390
        %426 = vmatprep.subr.mxu0 0.0
        %427 = vmatpush1.msra.mxu0 %v389
        %428 = vmatprep.subr.mxu0 0.0
        %429 = vmatpush1.msra.mxu0 %v388
        %430 = vmatprep.subr.mxu0 0.0
        %431 = vmatpush2.msra.mxu0 0.0
        %432 = vmatprep.subr.mxu0 0.0
        %433 = vmatpush2.msra.mxu0 0.0
        %434 = vmatprep.subr.mxu0 0.0
        %435 = vmatpush2.msra.mxu0 0.0
        %436 = vmatprep.subr.mxu0 0.0
        %437 = vmatpush2.msra.mxu0 0.0
        %438 = vmatprep.subr.mxu0 0.0
        %439 = vmatpush2.msra.mxu0 0.0
        %440 = vmatprep.subr.mxu0 0.0
        %441 = vmatpush2.msra.mxu0 0.0
        %442 = vmatprep.subr.mxu0 0.0
        %443 = vmatpush2.msra.mxu0 0.0
        %444 = vmatprep.subr.mxu0 0.0
        %445 = vmatpush2.msra.mxu0 0.0
        %446 = vmatprep.subr.mxu0 0.0
        %447 = vmatpush2.msra.mxu0 0.0
        %448 = vmatprep.subr.mxu0 0.0
        %449 = vmatpush2.msra.mxu0 0.0
        %450 = vmatprep.subr.mxu0 0.0
        %451 = vmatpush2.msra.mxu0 0.0
        %452 = vmatprep.subr.mxu0 0.0
        %453 = vmatpush2.msra.mxu0 0.0
        %454 = vmatprep.subr.mxu0 0.0
        %455 = vmatpush2.msra.mxu0 0.0
        %456 = vmatprep.subr.mxu0 0.0
        %457 = vmatpush2.msra.mxu0 0.0
        %458 = vmatprep.subr.mxu0 0.0
        %459 = vmatpush2.msra.mxu0 0.0
        %460 = vmatprep.subr.mxu0 0.0
        %461 = vmatpush2.msra.mxu0 0.0
        %462 = vmatprep.mubr.f32.mxu0 0.0
        %463 = vmatmul.mubr.f32.gmra.mxu0 %v396
        %v464 = vpop.f32.mrf.mxu0
        %v465 = vadd.f32 %v393, %v464
        %v466 = vpop.f32.mrf.mxu0
        %467 = vdwg.mxu0
        %v468 = vxor.u32 %v465, 2147483648
        %v469 = vmul.f32 %v468, 1.442695
        %v470 = vpow.pop %v469
        %v471 = vadd.f32 %v470, 1.0
        %v472 = vrcp.pop %v471
        %v473 = vmul.f32 1.0, %v472
        %474 = vst.msk [vmem:[%s245] sm:$0xff] %vm375, %v473
      $region48: #{multilabel_net_forward.1} parent=39 // pred_fallthru
        _
      %p475 = scmp.lt.s32.totalorder %s20, 1
      %s476 = scalar_select %p475, %s20, 1
      %s477 = smul.addr %s476, 8
      %s478 = scalar_lea.vmem %s5, %s477
      // Predicated region
      $region49: #{multilabel_net_forward.1} parent=39 // pred_check
        %p479 = pneg %p158
      $region50: #{multilabel_net_forward.1} parent=39 // pred_check_branch
        %481 = sbr.rel (%p479) target = $region52
      $region51: #{multilabel_net_forward.1} parent=39 // pred_region
        _
      $region52: #{multilabel_net_forward.1} parent=39 // pred_fallthru
        _
    $region40: #{multilabel_net_forward.1} parent=5 // pred_fallthru
      _
    %p482 = scmp.le.s32.totalorder 2, %s11
    // Predicated region
    $region53: #{multilabel_net_forward.1} parent=5 // pred_check
      %p483 = pneg %p482
    $region54: #{multilabel_net_forward.1} parent=5 // pred_check_branch
      %485 = sbr.rel (%p483) target = $region56
    $region55: #{multilabel_net_forward.1} parent=5 // pred_region
      %s486 = ssub.s32 %s11, 2
      // Predicated region
      $region57: #{multilabel_net_forward.1} parent=55 // pred_check
        %p487 = pneg %p164
      $region58: #{multilabel_net_forward.1} parent=55 // pred_check_branch
        %489 = sbr.rel (%p487) target = $region60
      $region59: #{multilabel_net_forward.1} parent=55 // pred_region
        %p490 = scmp.lt.s32.totalorder %s22, 1
        %s491 = scalar_select %p490, %s22, 1
        %s492 = smul.addr %s491, 8
        %s493 = scalar_lea.vmem %s5, %s492
      $region60: #{multilabel_net_forward.1} parent=55 // pred_fallthru
        _
    $region56: #{multilabel_net_forward.1} parent=5 // pred_fallthru
      _
  $region6: #{multilabel_net_forward.1} parent=0 // loop_footer
    %s15 = sadd.s32 1, %s11
  $region7: #{multilabel_net_forward.1} parent=0 // loop_footer_branch
    %10 = sbr.rel target = $region3
  $region8: #{multilabel_net_forward.1} parent=0 // loop_exit
    _

</llo_original>
